<compile_context>
chip_gen: v5e
topology: v5e:2x2
jax: 0.10.0
libtpu: 0.0.40
codegen_flags: <defaults>
</compile_context>

<pallas_src>
import functools

import jax
import jax.numpy as jnp
from jax.experimental import pallas as pl
from jax.experimental.pallas import tpu as pltpu

LEAKY_SLOPE = 0.01  # PyTorch nn.LeakyReLU default negative_slope
LANE = 128
SUBLANE = 8


def _round_up(x, m):
    return (x + m - 1) // m * m


def _cdiv(a, b):
    return (a + b - 1) // b


# ---------------------------------------------------------------------------
# Fused kernel: x -> [dot + bias + LeakyReLU]*(L-1) -> dot + bias
# refs layout: x_ref, (w_ref, b_ref) * n_layers, o_ref
# Weight output dims are pre-padded to 128 lanes; padding is self-consistent
# (padded lanes stay exactly 0 through bias and LeakyReLU, and hit zero weight
# rows in the next layer).
# ---------------------------------------------------------------------------
def _fcn_fused_kernel(*refs, n_layers: int):
    x_ref = refs[0]
    o_ref = refs[-1]

    h = x_ref[...].astype(jnp.float32)
    for l in range(n_layers):
        w_ref = refs[1 + 2 * l]   # (K_l, Np_l) bf16, pre-transposed
        b_ref = refs[2 + 2 * l]   # (1, Np_l) f32
        # bf16 MXU inputs, f32 accumulation; bias added in f32.
        h = jnp.dot(h.astype(jnp.bfloat16), w_ref[...],
                    preferred_element_type=jnp.float32) + b_ref[...]
        if l < n_layers - 1:
            # LeakyReLU: single VPU max (slope < 1 so max(y, a*y) == leaky(y))
            h = jnp.maximum(h, LEAKY_SLOPE * h)
    o_ref[...] = h.astype(o_ref.dtype)


def _fcn_pallas(x_pad, prepared, *, tm):
    """One pallas_call for the whole MLP. x_pad: (Mp, K) with Mp % tm == 0."""
    Mp, K = x_pad.shape
    n_layers = len(prepared)
    Np_last = prepared[-1][0].shape[1]
    grid = (Mp // tm,)

    # x: batch-tiled; last dim kept at its true width (full array dim).
    in_specs = [pl.BlockSpec((tm, K), lambda i: (i, 0))]
    flat_inputs = [x_pad]
    flops = 0
    bytes_accessed = x_pad.size * x_pad.dtype.itemsize
    for (w_t, b2d) in prepared:
        kp, np_ = w_t.shape
        # Constant index_map -> single buffer: no point double-buffering a
        # block that never changes; halves resident VMEM for weights/biases.
        in_specs.append(pl.BlockSpec((kp, np_), lambda i: (0, 0),
                                     pipeline_mode=pl.Buffered(1)))
        in_specs.append(pl.BlockSpec((1, np_), lambda i: (0, 0),
                                     pipeline_mode=pl.Buffered(1)))
        flat_inputs += [w_t, b2d]
        flops += 2 * Mp * kp * np_
        bytes_accessed += w_t.size * w_t.dtype.itemsize + b2d.size * b2d.dtype.itemsize
    bytes_accessed += Mp * Np_last * x_pad.dtype.itemsize

    kernel = functools.partial(_fcn_fused_kernel, n_layers=n_layers)
    return pl.pallas_call(
        kernel,
        out_shape=jax.ShapeDtypeStruct((Mp, Np_last), x_pad.dtype),
        grid_spec=pltpu.PrefetchScalarGridSpec(
            num_scalar_prefetch=0,
            grid=grid,
            in_specs=in_specs,
            out_specs=pl.BlockSpec((tm, Np_last), lambda i: (i, 0)),
        ),
        compiler_params=pltpu.CompilerParams(
            dimension_semantics=("parallel",),
        ),
        cost_estimate=pl.CostEstimate(
            flops=flops, transcendentals=0, bytes_accessed=bytes_accessed
        ),
    )(*flat_inputs)


# ---------------------------------------------------------------------------
# Parameter handling
# ---------------------------------------------------------------------------
def init_fcn_params(key, input_size, layer_sizes, output_size, dtype=jnp.float32):
    """Deterministic init matching torch.nn.Linear parameter shapes: (out, in)."""
    size_list = [input_size] + list(layer_sizes)
    dims = [(size_list[i], size_list[i + 1]) for i in range(len(size_list) - 1)]
    dims.append((size_list[-1], output_size))

    params = []
    for (fan_in, fan_out) in dims:
        key, kw, kb = jax.random.split(key, 3)
        bound = 1.0 / jnp.sqrt(fan_in)
        W = jax.random.uniform(kw, (fan_out, fan_in), dtype, -bound, bound)
        b = jax.random.uniform(kb, (fan_out,), dtype, -bound, bound)
        params.append((W, b))
    return params


def prepare_fcn_params(params, weight_dtype=jnp.bfloat16):
    """One-time prep: transpose W to (in, out), cast weights to bf16, and pad
    only the OUTPUT (lane) dim of each layer to 128.  The input dim of layer l
    is padded only to match layer l-1's padded output; layer 0 keeps its true
    fan_in so x needs NO runtime K-padding.  Biases stay f32 (added after the
    f32 accumulation)."""
    prepared = []
    prev_out_padded = None
    for (W, b) in params:
        fan_out, fan_in = W.shape
        kp = fan_in if prev_out_padded is None else prev_out_padded
        np_ = _round_up(fan_out, LANE)
        w_t = jnp.zeros((kp, np_), weight_dtype).at[:fan_in, :fan_out].set(
            W.T.astype(weight_dtype))
        b2d = jnp.zeros((1, np_), jnp.float32).at[0, :fan_out].set(
            b.astype(jnp.float32))
        prepared.append((w_t, b2d))
        prev_out_padded = np_
    return prepared


@functools.partial(jax.jit, static_argnames=("out_features", "tm_target"))
def fcn_forward(x, prepared, *, out_features, tm_target=256):
    """Fused forward pass. x: (batch, in_features). Returns (batch, out_features)."""
    M, K = x.shape
    assert K == prepared[0][0].shape[0], "input feature dim mismatch"

    # Batch-tile selection:
    #  * bound batch-pad waste to < SUBLANE rows per tile,
    #  * guarantee >= 2 grid steps once M >= 16 so ("parallel",) can shard
    #    across v7x's 2 TensorCores,
    #  * tm_target=256 default; on v6e with large batches 512-1024 also fits
    #    (weights fully resident, h at tm=1024 x 128 f32 is only ~512 KB).
    n_tiles = max(1, _cdiv(M, tm_target))
    if M >= 2 * SUBLANE:
        n_tiles = max(n_tiles, 2)
    tm = _round_up(_cdiv(M, n_tiles), SUBLANE)
    Mp = tm * n_tiles
    if Mp != M:
        x = jnp.pad(x, ((0, Mp - M), (0, 0)))

    out_pad = _fcn_pallas(x, prepared, tm=tm)
    # Kernel output is lane-padded to 128; slice back to the logical shape.
    # (Consumers that can take the padded slab may skip this copy.)
    return out_pad[:M, :out_features]


if __name__ == "__main__":
    key = jax.random.PRNGKey(0)
    k_in, k_param = jax.random.split(key)

    # Small shapes consistent with the module: batch=8, input=32,
    # hidden layers [64, 48], output=16.
    batch = 8
    input_size = 32
    layer_sizes = [64, 48]
    output_size = 16

    x = jax.random.normal(k_in, (batch, input_size), jnp.float32)
    params = init_fcn_params(k_param, input_size, layer_sizes, output_size)
    prepared = prepare_fcn_params(params)   # one-time transpose + bf16 + lane padding

    out = fcn_forward(x, prepared, out_features=output_size)
    out = jax.block_until_ready(out)
    assert out.shape == (batch, output_size), out.shape

    # Reference 1: emulate the kernel's exact math (bf16 weights/activations,
    # f32 accumulation) -> tight tolerance.
    ref_bf = x
    for i, (W, b) in enumerate(params):
        ref_bf = jnp.dot(ref_bf.astype(jnp.bfloat16).astype(jnp.float32),
                         W.T.astype(jnp.bfloat16).astype(jnp.float32)) + b
        if i < len(params) - 1:
            ref_bf = jnp.where(ref_bf >= 0, ref_bf, LEAKY_SLOPE * ref_bf)
    assert jnp.allclose(out, ref_bf, atol=1e-3, rtol=1e-3)

    # Reference 2: full-f32 math (PyTorch-equivalent); tolerance loosened for
    # the bf16 weight storage.
    ref = x
    for i, (W, b) in enumerate(params):
        ref = ref @ W.T + b
        if i < len(params) - 1:
            ref = jnp.where(ref >= 0, ref, LEAKY_SLOPE * ref)
    assert jnp.allclose(out, ref, atol=5e-2, rtol=5e-2)

    print("KERNEL_OK")
</pallas_src>

<mosaic_0001>
module attributes {stable_mosaic.version = 11 : i64} {
  func.func @_fcn_fused_kernel(%arg0: i32, %arg1: memref<8x32xf32, #tpu.memory_space<vmem>>, %arg2: memref<32x128xbf16, #tpu.memory_space<vmem>>, %arg3: memref<1x128xf32, #tpu.memory_space<vmem>>, %arg4: memref<128x128xbf16, #tpu.memory_space<vmem>>, %arg5: memref<1x128xf32, #tpu.memory_space<vmem>>, %arg6: memref<128x128xbf16, #tpu.memory_space<vmem>>, %arg7: memref<1x128xf32, #tpu.memory_space<vmem>>, %arg8: memref<8x128xf32, #tpu.memory_space<vmem>>) attributes {dimension_semantics = [#tpu.dimension_semantics<parallel>], iteration_bounds = array<i64: 1>, scalar_prefetch = 0 : i64, scratch_operands = 0 : i64, tpu.core_type = #tpu.core_type<tc>, window_params = [{transform_indices = @transform_0, window_bounds = array<i64: 8, 32>}, {pipeline_mode = #tpu.pipeline_mode<synchronous>, transform_indices = @transform_1, window_bounds = array<i64: 32, 128>}, {pipeline_mode = #tpu.pipeline_mode<synchronous>, transform_indices = @transform_2, window_bounds = array<i64: 1, 128>}, {pipeline_mode = #tpu.pipeline_mode<synchronous>, transform_indices = @transform_3, window_bounds = array<i64: 128, 128>}, {pipeline_mode = #tpu.pipeline_mode<synchronous>, transform_indices = @transform_4, window_bounds = array<i64: 1, 128>}, {pipeline_mode = #tpu.pipeline_mode<synchronous>, transform_indices = @transform_5, window_bounds = array<i64: 128, 128>}, {pipeline_mode = #tpu.pipeline_mode<synchronous>, transform_indices = @transform_6, window_bounds = array<i64: 1, 128>}, {transform_indices = @transform_7, window_bounds = array<i64: 8, 128>}]} {
    %c0 = arith.constant 0 : index
    %c0_0 = arith.constant 0 : index
    %0 = vector.load %arg1[%c0, %c0_0] : memref<8x32xf32, #tpu.memory_space<vmem>>, vector<8x32xf32>
    %1 = arith.truncf %0 : vector<8x32xf32> to vector<8x32xbf16>
    %c0_1 = arith.constant 0 : index
    %c0_2 = arith.constant 0 : index
    %2 = vector.load %arg2[%c0_1, %c0_2] : memref<32x128xbf16, #tpu.memory_space<vmem>>, vector<32x128xbf16>
    %cst = arith.constant dense<0.000000e+00> : vector<8x128xf32>
    %3 = tpu.matmul %1, %2, %cst {dimension_numbers = #tpu.dot_dimension_numbers<[1], [0], [0], [1], [0, 0, 1, 1], [], []>} : vector<8x32xbf16>, vector<32x128xbf16>, vector<8x128xf32> -> vector<8x128xf32>
    %c0_3 = arith.constant 0 : index
    %c0_4 = arith.constant 0 : index
    %4 = vector.load %arg3[%c0_3, %c0_4] : memref<1x128xf32, #tpu.memory_space<vmem>>, vector<1x128xf32>
    %5 = vector.broadcast %4 : vector<1x128xf32> to vector<8x128xf32>
    %6 = arith.addf %3, %5 : vector<8x128xf32>
    %cst_5 = arith.constant 0.00999999977 : f32
    %7 = vector.broadcast %cst_5 : f32 to vector<8x128xf32>
    %8 = arith.mulf %7, %6 : vector<8x128xf32>
    %9 = arith.maximumf %6, %8 : vector<8x128xf32>
    %10 = arith.truncf %9 : vector<8x128xf32> to vector<8x128xbf16>
    %c0_6 = arith.constant 0 : index
    %c0_7 = arith.constant 0 : index
    %11 = vector.load %arg4[%c0_6, %c0_7] : memref<128x128xbf16, #tpu.memory_space<vmem>>, vector<128x128xbf16>
    %cst_8 = arith.constant dense<0.000000e+00> : vector<8x128xf32>
    %12 = tpu.matmul %10, %11, %cst_8 {dimension_numbers = #tpu.dot_dimension_numbers<[1], [0], [0], [1], [0, 0, 1, 1], [], []>} : vector<8x128xbf16>, vector<128x128xbf16>, vector<8x128xf32> -> vector<8x128xf32>
    %c0_9 = arith.constant 0 : index
    %c0_10 = arith.constant 0 : index
    %13 = vector.load %arg5[%c0_9, %c0_10] : memref<1x128xf32, #tpu.memory_space<vmem>>, vector<1x128xf32>
    %14 = vector.broadcast %13 : vector<1x128xf32> to vector<8x128xf32>
    %15 = arith.addf %12, %14 : vector<8x128xf32>
    %cst_11 = arith.constant 0.00999999977 : f32
    %16 = vector.broadcast %cst_11 : f32 to vector<8x128xf32>
    %17 = arith.mulf %16, %15 : vector<8x128xf32>
    %18 = arith.maximumf %15, %17 : vector<8x128xf32>
    %19 = arith.truncf %18 : vector<8x128xf32> to vector<8x128xbf16>
    %c0_12 = arith.constant 0 : index
    %c0_13 = arith.constant 0 : index
    %20 = vector.load %arg6[%c0_12, %c0_13] : memref<128x128xbf16, #tpu.memory_space<vmem>>, vector<128x128xbf16>
    %cst_14 = arith.constant dense<0.000000e+00> : vector<8x128xf32>
    %21 = tpu.matmul %19, %20, %cst_14 {dimension_numbers = #tpu.dot_dimension_numbers<[1], [0], [0], [1], [0, 0, 1, 1], [], []>} : vector<8x128xbf16>, vector<128x128xbf16>, vector<8x128xf32> -> vector<8x128xf32>
    %c0_15 = arith.constant 0 : index
    %c0_16 = arith.constant 0 : index
    %22 = vector.load %arg7[%c0_15, %c0_16] : memref<1x128xf32, #tpu.memory_space<vmem>>, vector<1x128xf32>
    %23 = vector.broadcast %22 : vector<1x128xf32> to vector<8x128xf32>
    %24 = arith.addf %21, %23 : vector<8x128xf32>
    %c0_17 = arith.constant 0 : index
    %c0_18 = arith.constant 0 : index
    %25 = vector.load %arg8[%c0_17, %c0_18] : memref<8x128xf32, #tpu.memory_space<vmem>>, vector<8x128xf32>
    tpu.vector_store %arg8[%c0_17, %c0_18], %24 {strides = array<i32>} : memref<8x128xf32, #tpu.memory_space<vmem>>, vector<8x128xf32>,
    return
  }
  func.func @transform_0(%arg0: i32) -> (i32, i32) {
    %c0_i32 = arith.constant 0 : i32
    %c0_i32_0 = arith.constant 0 : i32
    return %arg0, %c0_i32 : i32, i32
  }
  func.func @transform_1(%arg0: i32) -> (i32, i32) {
    %c0_i32 = arith.constant 0 : i32
    %c0_i32_0 = arith.constant 0 : i32
    %c0_i32_1 = arith.constant 0 : i32
    return %c0_i32, %c0_i32_0 : i32, i32
  }
  func.func @transform_2(%arg0: i32) -> (i32, i32) {
    %c0_i32 = arith.constant 0 : i32
    %c0_i32_0 = arith.constant 0 : i32
    %c0_i32_1 = arith.constant 0 : i32
    return %c0_i32, %c0_i32_0 : i32, i32
  }
  func.func @transform_3(%arg0: i32) -> (i32, i32) {
    %c0_i32 = arith.constant 0 : i32
    %c0_i32_0 = arith.constant 0 : i32
    %c0_i32_1 = arith.constant 0 : i32
    return %c0_i32, %c0_i32_0 : i32, i32
  }
  func.func @transform_4(%arg0: i32) -> (i32, i32) {
    %c0_i32 = arith.constant 0 : i32
    %c0_i32_0 = arith.constant 0 : i32
    %c0_i32_1 = arith.constant 0 : i32
    return %c0_i32, %c0_i32_0 : i32, i32
  }
  func.func @transform_5(%arg0: i32) -> (i32, i32) {
    %c0_i32 = arith.constant 0 : i32
    %c0_i32_0 = arith.constant 0 : i32
    %c0_i32_1 = arith.constant 0 : i32
    return %c0_i32, %c0_i32_0 : i32, i32
  }
  func.func @transform_6(%arg0: i32) -> (i32, i32) {
    %c0_i32 = arith.constant 0 : i32
    %c0_i32_0 = arith.constant 0 : i32
    %c0_i32_1 = arith.constant 0 : i32
    return %c0_i32, %c0_i32_0 : i32, i32
  }
  func.func @transform_7(%arg0: i32) -> (i32, i32) {
    %c0_i32 = arith.constant 0 : i32
    %c0_i32_0 = arith.constant 0 : i32
    return %arg0, %c0_i32 : i32, i32
  }
}

</mosaic_0001>

<llo_original>
// kernel: fcn_forward.1
$region0: #{fcn_forward.1}
  #allocation0 [shape = 'u32[]', space=smem, size = 0x4, offset = 0x4, fixed_abs, tag = 'smem constant byte address 0x4 - core index']
  #allocation1 [shape = 'u32[72,128]{1,0:T(1,128)}', space=vmem, size = 0x9000, scoped, tag = 'internal scratch']
  %s0 = inlined_call_operand.hbm [shape: f32[8,32], index: 0, kind: input, shape index: {}]
  %s1 = inlined_call_operand.hbm [shape: bf16[32,128], index: 1, kind: input, shape index: {}]
  %s2 = inlined_call_operand.vmem [shape: f32[1,128], index: 2, kind: input, shape index: {}]
  %s3 = inlined_call_operand.hbm [shape: bf16[128,128], index: 3, kind: input, shape index: {}]
  %s4 = inlined_call_operand.vmem [shape: f32[1,128], index: 4, kind: input, shape index: {}]
  %s5 = inlined_call_operand.hbm [shape: bf16[128,128], index: 5, kind: input, shape index: {}]
  %s6 = inlined_call_operand.vmem [shape: f32[1,128], index: 6, kind: input, shape index: {}]
  %s7 = inlined_call_operand.hbm [shape: f32[8,128], index: 7, kind: output, shape index: {}]
  %s8 = sld [smem:[#allocation0]]
  $region54: #{fcn_forward.1} parent=0
    _
  %s10 = ssub.s32 1, %s8
  %s11 = scalar_select 0, %s10, %s8
  $region1: #{fcn_forward.1} parent=0
    #allocation2 [shape = 'u8[4096]{0}', space=vmem, size = 0x1000, scoped, tag = 'input window, operand 0, single buffered']
    #allocation3 [shape = 's32[1]{0}', space=sflag, size = 0x4, scoped, tag = 'scoped memory for fcn_forward.1']
    #allocation4 [shape = 's32[1]{0}', space=sflag, size = 0x4, scoped, tag = 'scoped memory for fcn_forward.1']
    #allocation5 [shape = 'u8[8192]{0}', space=vmem, size = 0x2000, scoped, tag = 'input window, operand 1, single buffered']
    #allocation6 [shape = 's32[1]{0}', space=sflag, size = 0x4, scoped, tag = 'scoped memory for fcn_forward.1']
    #allocation7 [shape = 'u8[32768]{0}', space=vmem, size = 0x8000, scoped, tag = 'input window, operand 3, single buffered']
    #allocation8 [shape = 'u8[32768]{0}', space=vmem, size = 0x8000, scoped, tag = 'input window, operand 5, single buffered']
    #allocation9 [shape = 's32[1]{0}', space=sflag, size = 0x4, scoped, tag = 'scoped memory for fcn_forward.1']
    #allocation10 [shape = 'u8[4096]{0}', space=vmem, size = 0x1000, scoped, tag = 'output window, operand 0, single buffered']
    %12 = vsyncpa [#allocation3], 0
    %13 = vsyncpa [#allocation6], 0
    %14 = vsyncpa [#allocation9], 0
    %15 = vsyncpa [#allocation4], 0
    // Predicated region
    $region2: #{fcn_forward.1} parent=1 // pred_check
      _
    $region3: #{fcn_forward.1} parent=1 // pred_check_branch
      %17 = sbr.rel (0) target = $region5
    $region4: #{fcn_forward.1} parent=1 // pred_region
      %19 = vsyncadd [#allocation3], 0
      %s21 = sshll.u32 %s0, 4
      %s22 = int_to_ptr.hbm [resolvable:$true] %s21
      %s23 = sshll.u32 [#allocation2], 4
      %s24 = int_to_ptr.vmem [resolvable:$true] %s23
      %26 = dma.hbm_to_vmem [thread:$0]  %s22, 128, %s24, [#allocation3]
    $region5: #{fcn_forward.1} parent=1 // pred_fallthru
      _
    // Predicated region
    $region6: #{fcn_forward.1} parent=1 // pred_check
      _
    $region7: #{fcn_forward.1} parent=1 // pred_check_branch
      %28 = sbr.rel (0) target = $region9
    $region8: #{fcn_forward.1} parent=1 // pred_region
      %30 = vsyncadd [#allocation6], 0
      %s31 = sshll.u32 %s1, 4
      %s32 = int_to_ptr.hbm [resolvable:$true] %s31
      %s33 = sshll.u32 [#allocation5], 4
      %s34 = int_to_ptr.vmem [resolvable:$true] %s33
      %39 = dma.hbm_to_vmem [thread:$0]  %s32, 256, %s34, [#allocation6], 64, 64, 4
    $region9: #{fcn_forward.1} parent=1 // pred_fallthru
      _
    // Predicated region
    $region10: #{fcn_forward.1} parent=1 // pred_check
      _
    $region11: #{fcn_forward.1} parent=1 // pred_check_branch
      %41 = sbr.rel (0) target = $region13
    $region12: #{fcn_forward.1} parent=1 // pred_region
      _
    $region13: #{fcn_forward.1} parent=1 // pred_fallthru
      _
    // Predicated region
    $region14: #{fcn_forward.1} parent=1 // pred_check
      _
    $region15: #{fcn_forward.1} parent=1 // pred_check_branch
      %43 = sbr.rel (0) target = $region17
    $region16: #{fcn_forward.1} parent=1 // pred_region
      %45 = vsyncadd [#allocation6], 0
      %s46 = sshll.u32 %s3, 4
      %s47 = int_to_ptr.hbm [resolvable:$true] %s46
      %s48 = sshll.u32 [#allocation7], 4
      %s49 = int_to_ptr.vmem [resolvable:$true] %s48
      %54 = dma.hbm_to_vmem [thread:$0]  %s47, 1024, %s49, [#allocation6], 64, 64, 4
    $region17: #{fcn_forward.1} parent=1 // pred_fallthru
      _
    // Predicated region
    $region18: #{fcn_forward.1} parent=1 // pred_check
      _
    $region19: #{fcn_forward.1} parent=1 // pred_check_branch
      %56 = sbr.rel (0) target = $region21
    $region20: #{fcn_forward.1} parent=1 // pred_region
      _
    $region21: #{fcn_forward.1} parent=1 // pred_fallthru
      _
    // Predicated region
    $region22: #{fcn_forward.1} parent=1 // pred_check
      _
    $region23: #{fcn_forward.1} parent=1 // pred_check_branch
      %58 = sbr.rel (0) target = $region25
    $region24: #{fcn_forward.1} parent=1 // pred_region
      %60 = vsyncadd [#allocation9], 0
      %s61 = sshll.u32 %s5, 4
      %s62 = int_to_ptr.hbm [resolvable:$true] %s61
      %s63 = sshll.u32 [#allocation8], 4
      %s64 = int_to_ptr.vmem [resolvable:$true] %s63
      %69 = dma.hbm_to_vmem [thread:$0]  %s62, 1024, %s64, [#allocation9], 64, 64, 4
    $region25: #{fcn_forward.1} parent=1 // pred_fallthru
      _
    // Predicated region
    $region26: #{fcn_forward.1} parent=1 // pred_check
      _
    $region27: #{fcn_forward.1} parent=1 // pred_check_branch
      %71 = sbr.rel (0) target = $region29
    $region28: #{fcn_forward.1} parent=1 // pred_region
      _
    $region29: #{fcn_forward.1} parent=1 // pred_fallthru
      _
    // Predicated region
    $region30: #{fcn_forward.1} parent=1 // pred_check
      _
    $region31: #{fcn_forward.1} parent=1 // pred_check_branch
      %73 = sbr.rel (0) target = $region33
    $region32: #{fcn_forward.1} parent=1 // pred_region
      %75 = dma.done [#allocation3], 128
    $region33: #{fcn_forward.1} parent=1 // pred_fallthru
      _
    // Predicated region
    $region34: #{fcn_forward.1} parent=1 // pred_check
      _
    $region35: #{fcn_forward.1} parent=1 // pred_check_branch
      %77 = sbr.rel (0) target = $region37
    $region36: #{fcn_forward.1} parent=1 // pred_region
      %79 = dma.done [#allocation6], 256
    $region37: #{fcn_forward.1} parent=1 // pred_fallthru
      _
    // Predicated region
    $region38: #{fcn_forward.1} parent=1 // pred_check
      _
    $region39: #{fcn_forward.1} parent=1 // pred_check_branch
      %81 = sbr.rel (0) target = $region41
    $region40: #{fcn_forward.1} parent=1 // pred_region
      %83 = dma.done [#allocation6], 1024
    $region41: #{fcn_forward.1} parent=1 // pred_fallthru
      _
    // Predicated region
    $region42: #{fcn_forward.1} parent=1 // pred_check
      _
    $region43: #{fcn_forward.1} parent=1 // pred_check_branch
      %85 = sbr.rel (0) target = $region45
    $region44: #{fcn_forward.1} parent=1 // pred_region
      %87 = dma.done [#allocation9], 1024
    $region45: #{fcn_forward.1} parent=1 // pred_fallthru
      _
    %v89 = vld [vmem:[#allocation2] sm:$0xff]
    %v90 = vpack.c.bf16 %v89, %v89
    %v91 = vld [vmem:[#allocation5] sm:$0xf]
    %v92 = vld [vmem:[#allocation5 + $0x4] sm:$0xf]
    %v93 = vld [vmem:[#allocation5 + $0x8] sm:$0xf]
    %v94 = vld [vmem:[#allocation5 + $0xc] sm:$0xf]
    %v95 = vld [vmem:[%s2] sm:$0x1]
    %v97 = vperm.slane %v95, 0
    %v103 = vunpack.c.l.b16 %v91
    %v104 = vunpack.c.l.b16 %v92
    %v105 = vunpack.c.l.b16 %v93
    %v106 = vunpack.c.l.b16 %v94
    %v107 = vpack.c.b16 %v104, %v103
    %v108 = vpack.c.b16 %v106, %v105
    %vm111 = vcmask 261120
    %v113 = vsel %vm111, %v90, 0
    %115 = vmatpush.bf16.msra.mxu0 0
    %116 = vmatpush.bf16.msra.mxu0 0
    %117 = vmatpush.bf16.msra.mxu0 0
    %118 = vmatpush.bf16.msra.mxu0 0
    %119 = vmatpush.bf16.msra.mxu0 0
    %120 = vmatpush.bf16.msra.mxu0 0
    %121 = vmatpush.bf16.msra.mxu0 %v108
    %122 = vmatpush.bf16.msra.mxu0 %v107
    %123 = vmatmul.bf16.gmra.mxu0 %v113
    %v124 = vpop.f32.mrf.mxu0
    %v125 = vadd.f32 %v97, %v124
    %v126 = vpop.f32.mrf.mxu0
    %127 = vdwg.mxu0
    %v128 = vmul.f32 %v125, 0.01
    %v129 = vmax.f32 %v125, %v128
    %v130 = vpack.c.bf16 %v129, %v129
    %v131 = vld [vmem:[#allocation7] sm:$0xf]
    %v132 = vld [vmem:[#allocation7 + $0x4] sm:$0xf]
    %v133 = vld [vmem:[#allocation7 + $0x8] sm:$0xf]
    %v134 = vld [vmem:[#allocation7 + $0xc] sm:$0xf]
    %v135 = vld [vmem:[#allocation7 + $0x10] sm:$0xf]
    %v136 = vld [vmem:[#allocation7 + $0x14] sm:$0xf]
    %v137 = vld [vmem:[#allocation7 + $0x18] sm:$0xf]
    %v138 = vld [vmem:[#allocation7 + $0x1c] sm:$0xf]
    %v139 = vld [vmem:[#allocation7 + $0x20] sm:$0xf]
    %v140 = vld [vmem:[#allocation7 + $0x24] sm:$0xf]
    %v141 = vld [vmem:[#allocation7 + $0x28] sm:$0xf]
    %v142 = vld [vmem:[#allocation7 + $0x2c] sm:$0xf]
    %v143 = vld [vmem:[#allocation7 + $0x30] sm:$0xf]
    %v144 = vld [vmem:[#allocation7 + $0x34] sm:$0xf]
    %v145 = vld [vmem:[#allocation7 + $0x38] sm:$0xf]
    %v146 = vld [vmem:[#allocation7 + $0x3c] sm:$0xf]
    %v147 = vld [vmem:[%s4] sm:$0x1]
    %v149 = vperm.slane %v147, 0
    %v167 = vunpack.c.l.b16 %v131
    %v168 = vunpack.c.l.b16 %v132
    %v169 = vunpack.c.l.b16 %v133
    %v170 = vunpack.c.l.b16 %v134
    %v171 = vunpack.c.l.b16 %v135
    %v172 = vunpack.c.l.b16 %v136
    %v173 = vunpack.c.l.b16 %v137
    %v174 = vunpack.c.l.b16 %v138
    %v175 = vunpack.c.l.b16 %v139
    %v176 = vunpack.c.l.b16 %v140
    %v177 = vunpack.c.l.b16 %v141
    %v178 = vunpack.c.l.b16 %v142
    %v179 = vunpack.c.l.b16 %v143
    %v180 = vunpack.c.l.b16 %v144
    %v181 = vunpack.c.l.b16 %v145
    %v182 = vunpack.c.l.b16 %v146
    %v183 = vpack.c.b16 %v168, %v167
    %v184 = vpack.c.b16 %v170, %v169
    %v185 = vpack.c.b16 %v172, %v171
    %v186 = vpack.c.b16 %v174, %v173
    %v187 = vpack.c.b16 %v176, %v175
    %v188 = vpack.c.b16 %v178, %v177
    %v189 = vpack.c.b16 %v180, %v179
    %v190 = vpack.c.b16 %v182, %v181
    %199 = vmatpush.bf16.msra.mxu0 %v190
    %200 = vmatpush.bf16.msra.mxu0 %v189
    %201 = vmatpush.bf16.msra.mxu0 %v188
    %202 = vmatpush.bf16.msra.mxu0 %v187
    %203 = vmatpush.bf16.msra.mxu0 %v186
    %204 = vmatpush.bf16.msra.mxu0 %v185
    %205 = vmatpush.bf16.msra.mxu0 %v184
    %206 = vmatpush.bf16.msra.mxu0 %v183
    %207 = vmatmul.bf16.gmra.mxu0 %v130
    %v208 = vpop.f32.mrf.mxu0
    %v209 = vadd.f32 %v149, %v208
    %v210 = vpop.f32.mrf.mxu0
    %211 = vdwg.mxu0
    %v212 = vmul.f32 %v209, 0.01
    %v213 = vmax.f32 %v209, %v212
    %v214 = vpack.c.bf16 %v213, %v213
    %v215 = vld [vmem:[#allocation8] sm:$0xf]
    %v216 = vld [vmem:[#allocation8 + $0x4] sm:$0xf]
    %v217 = vld [vmem:[#allocation8 + $0x8] sm:$0xf]
    %v218 = vld [vmem:[#allocation8 + $0xc] sm:$0xf]
    %v219 = vld [vmem:[#allocation8 + $0x10] sm:$0xf]
    %v220 = vld [vmem:[#allocation8 + $0x14] sm:$0xf]
    %v221 = vld [vmem:[#allocation8 + $0x18] sm:$0xf]
    %v222 = vld [vmem:[#allocation8 + $0x1c] sm:$0xf]
    %v223 = vld [vmem:[#allocation8 + $0x20] sm:$0xf]
    %v224 = vld [vmem:[#allocation8 + $0x24] sm:$0xf]
    %v225 = vld [vmem:[#allocation8 + $0x28] sm:$0xf]
    %v226 = vld [vmem:[#allocation8 + $0x2c] sm:$0xf]
    %v227 = vld [vmem:[#allocation8 + $0x30] sm:$0xf]
    %v228 = vld [vmem:[#allocation8 + $0x34] sm:$0xf]
    %v229 = vld [vmem:[#allocation8 + $0x38] sm:$0xf]
    %v230 = vld [vmem:[#allocation8 + $0x3c] sm:$0xf]
    %v231 = vld [vmem:[%s6] sm:$0x1]
    %v233 = vperm.slane %v231, 0
    %v251 = vunpack.c.l.b16 %v215
    %v252 = vunpack.c.l.b16 %v216
    %v253 = vunpack.c.l.b16 %v217
    %v254 = vunpack.c.l.b16 %v218
    %v255 = vunpack.c.l.b16 %v219
    %v256 = vunpack.c.l.b16 %v220
    %v257 = vunpack.c.l.b16 %v221
    %v258 = vunpack.c.l.b16 %v222
    %v259 = vunpack.c.l.b16 %v223
    %v260 = vunpack.c.l.b16 %v224
    %v261 = vunpack.c.l.b16 %v225
    %v262 = vunpack.c.l.b16 %v226
    %v263 = vunpack.c.l.b16 %v227
    %v264 = vunpack.c.l.b16 %v228
    %v265 = vunpack.c.l.b16 %v229
    %v266 = vunpack.c.l.b16 %v230
    %v267 = vpack.c.b16 %v252, %v251
    %v268 = vpack.c.b16 %v254, %v253
    %v269 = vpack.c.b16 %v256, %v255
    %v270 = vpack.c.b16 %v258, %v257
    %v271 = vpack.c.b16 %v260, %v259
    %v272 = vpack.c.b16 %v262, %v261
    %v273 = vpack.c.b16 %v264, %v263
    %v274 = vpack.c.b16 %v266, %v265
    %283 = vmatpush.bf16.msra.mxu0 %v274
    %284 = vmatpush.bf16.msra.mxu0 %v273
    %285 = vmatpush.bf16.msra.mxu0 %v272
    %286 = vmatpush.bf16.msra.mxu0 %v271
    %287 = vmatpush.bf16.msra.mxu0 %v270
    %288 = vmatpush.bf16.msra.mxu0 %v269
    %289 = vmatpush.bf16.msra.mxu0 %v268
    %290 = vmatpush.bf16.msra.mxu0 %v267
    %291 = vmatmul.bf16.gmra.mxu0 %v214
    %v292 = vpop.f32.mrf.mxu0
    %v293 = vadd.f32 %v233, %v292
    %v294 = vpop.f32.mrf.mxu0
    %295 = vdwg.mxu0
    %296 = vst [vmem:[#allocation10] sm:$0xff] %v293
    // Predicated region
    $region46: #{fcn_forward.1} parent=1 // pred_check
      _
    $region47: #{fcn_forward.1} parent=1 // pred_check_branch
      %298 = sbr.rel (0) target = $region49
    $region48: #{fcn_forward.1} parent=1 // pred_region
      %300 = vsyncadd [#allocation4], 0
      %s302 = sshll.u32 [#allocation10], 4
      %s303 = int_to_ptr.vmem [resolvable:$true] %s302
      %s304 = sshll.u32 %s7, 4
      %s305 = int_to_ptr.hbm [resolvable:$true] %s304
      %307 = dma.vmem_to_hbm [thread:$0]  %s303, 128, %s305, [#allocation4]
    $region49: #{fcn_forward.1} parent=1 // pred_fallthru
      _
    // Predicated region
    $region50: #{fcn_forward.1} parent=1 // pred_check
      _
    $region51: #{fcn_forward.1} parent=1 // pred_check_branch
      %309 = sbr.rel (0) target = $region53
    $region52: #{fcn_forward.1} parent=1 // pred_region
      %311 = dma.done [#allocation4], 128
    $region53: #{fcn_forward.1} parent=1 // pred_fallthru
      _
    %312 = vsyncpa [#allocation3], 1
    %313 = vsyncpa [#allocation6], 1
    %314 = vsyncpa [#allocation9], 1
    %315 = vsyncpa [#allocation4], 1

</llo_original>
